<compile_context>
chip_gen: v5e
topology: v5e:2x2
jax: 0.10.0
libtpu: 0.0.40
codegen_flags: <defaults>
</compile_context>

<pallas_src>
import functools

import jax
import jax.numpy as jnp
from jax.experimental import pallas as pl
from jax.experimental.pallas import tpu as pltpu


# ----------------------------------------------------------------------------
# Pallas kernel: one fused GNN layer
# ----------------------------------------------------------------------------
def _gnn_layer_kernel(kcnt_ref, kidx_ref, a_ref, s_ref, xt_ref, *rest,
                      reassoc, apply_relu, final_log_softmax, c_out_real):
    if reassoc:
        wr_ref, b_ref, o_ref, acc_ref = rest
    else:
        wl_ref, wr_ref, b_ref, o_ref, acc_ref = rest

    i = pl.program_id(0)            # dst (M) block
    t = pl.program_id(1)            # compacted K step
    nt = pl.num_programs(1)

    @pl.when(t == 0)
    def _():
        acc_ref[...] = jnp.zeros_like(acc_ref)

    # Aggregation: only the first kcnt[i] steps carry a non-empty A block.
    # (Steps beyond the count also re-use the previous block index, so their
    #  A / x HBM->VMEM DMAs are skipped entirely.)
    @pl.when(t < kcnt_ref[i])
    def _():
        acc_ref[...] += jnp.dot(a_ref[...], s_ref[...],
                                preferred_element_type=jnp.float32)

    # Finalize on the last step: projection + bias + relu / log_softmax.
    @pl.when(t == nt - 1)
    def _():
        if reassoc:
            # acc already holds (A @ (x @ Wl)); just add the root-node term.
            out = acc_ref[...] + jnp.dot(xt_ref[...], wr_ref[...],
                                         preferred_element_type=jnp.float32)
        else:
            agg = acc_ref[...].astype(jnp.bfloat16)
            out = (jnp.dot(agg, wl_ref[...], preferred_element_type=jnp.float32)
                   + jnp.dot(xt_ref[...], wr_ref[...],
                             preferred_element_type=jnp.float32))
        out = out + b_ref[...]
        if apply_relu:
            out = jnp.maximum(out, 0.0)
        if final_log_softmax:
            col = jax.lax.broadcasted_iota(jnp.int32, out.shape, 1)
            valid = col < c_out_real
            masked = jnp.where(valid, out, -jnp.inf)
            m = jnp.max(masked, axis=-1, keepdims=True)
            s = masked - m
            lse = jnp.log(jnp.sum(jnp.where(valid, jnp.exp(s), 0.0),
                                  axis=-1, keepdims=True))
            out = jnp.where(valid, s - lse, 0.0)   # padded lanes -> 0 (no -inf/NaN)
        o_ref[...] = out.astype(o_ref.dtype)


# ----------------------------------------------------------------------------
# Wrapper: padding / bf16 cast / block-sparsity tables / BlockSpecs
# ----------------------------------------------------------------------------
def _round_up(n, m):
    return ((n + m - 1) // m) * m


def _pad2d(a, rows, cols):
    return jnp.pad(a, ((0, rows - a.shape[0]), (0, cols - a.shape[1])))


def gnn_layer(edge_index, n_src, n_dst, x, Wl, bl, Wr, *,
              apply_relu, final_log_softmax,
              tm_cap=256, tk_cap=512, min_m_blocks=1):
    """One fused GNN layer (mean aggregation + lins_l/lins_r projection).

    x may carry row/channel zero/garbage padding from a previous layer; this is safe
    because A's padded columns are zero (garbage rows never enter the aggregation) and
    W/bias padded lanes are zero (padded channels contribute nothing).
    """
    n_x, c_x = x.shape
    c_in_real, c_out_real = Wl.shape
    assert n_x >= n_src >= n_dst and c_x >= c_in_real

    # --- tile selection (sublane axis mult. of 8, lane axis mult. of 128) ---
    tm = min(tm_cap, _round_up(n_dst, 8))
    if min_m_blocks > 1:                      # keep mb >= min_m_blocks (v7x: 2 TCs)
        tm = min(tm, max(8, _round_up(-(-n_dst // min_m_blocks), 8)))
    n_dst_pad = _round_up(n_dst, tm)
    tk = min(tk_cap, _round_up(max(n_x, n_dst_pad), 128))
    n_src_pad = _round_up(max(n_x, n_dst_pad), tk)
    c_in_pad = _round_up(c_x, 128)
    c_out_pad = _round_up(c_out_real, 128)
    mb, kb = n_dst_pad // tm, n_src_pad // tk

    src, dst = edge_index[0], edge_index[1]

    # --- normalized adjacency, built padded + cast in one pass ---
    deg = jnp.zeros((n_dst,), jnp.float32).at[dst].add(1.0)
    inv_deg = 1.0 / jnp.maximum(deg, 1.0)
    A_pad = (jnp.zeros((n_dst_pad, n_src_pad), jnp.float32)
             .at[dst, src].add(inv_deg[dst])).astype(jnp.bfloat16)

    # --- per-M-row compacted list of non-empty K blocks (from edge_index) ---
    bm = jnp.zeros((mb, kb), jnp.int32).at[dst // tm, src // tk].set(1)
    kcnt = jnp.sum(bm, axis=1).astype(jnp.int32)                     # (mb,)
    order = jnp.argsort(1 - bm, axis=1).astype(jnp.int32)            # non-empty first
    tt = jnp.arange(kb, dtype=jnp.int32)[None, :]
    clamp = jnp.minimum(tt, jnp.maximum(kcnt[:, None] - 1, 0))       # repeat last block
    kidx = jnp.take_along_axis(order, clamp, axis=1).reshape(-1)     # (mb*kb,) int32

    # --- operands ---
    x_pad = _pad2d(x, n_src_pad, c_in_pad).astype(jnp.bfloat16)
    Wl_pad = _pad2d(Wl, c_in_pad, c_out_pad).astype(jnp.bfloat16)
    Wr_pad = _pad2d(Wr, c_in_pad, c_out_pad).astype(jnp.bfloat16)
    b_pad = jnp.pad(bl, (0, c_out_pad - c_out_real)).reshape(1, c_out_pad)
    b_pad = b_pad.astype(jnp.float32)

    # Re-associated path: fold Wl into the streamed operand when it shrinks the K-loop.
    reassoc = c_out_pad <= c_in_pad
    if reassoc:
        stream = jnp.dot(x_pad, Wl_pad,
                         preferred_element_type=jnp.float32).astype(jnp.bfloat16)
        c_stream, acc_w = c_out_pad, c_out_pad
    else:
        stream, c_stream, acc_w = x_pad, c_in_pad, c_in_pad

    out_dtype = jnp.float32 if final_log_softmax else jnp.bfloat16
    kernel = functools.partial(_gnn_layer_kernel,
                               reassoc=reassoc,
                               apply_relu=apply_relu,
                               final_log_softmax=final_log_softmax,
                               c_out_real=c_out_real)

    # --- BlockSpecs (index maps read the scalar-prefetched tables) ---
    a_spec = pl.BlockSpec((tm, tk), lambda i, t, cnt, idx: (i, idx[i * kb + t]))
    s_spec = pl.BlockSpec((tk, c_stream), lambda i, t, cnt, idx: (idx[i * kb + t], 0))
    xt_spec = pl.BlockSpec((tm, c_in_pad), lambda i, t, cnt, idx: (i, 0))
    w_spec = pl.BlockSpec((c_in_pad, c_out_pad), lambda i, t, cnt, idx: (0, 0))
    b_spec = pl.BlockSpec((1, c_out_pad), lambda i, t, cnt, idx: (0, 0))
    o_spec = pl.BlockSpec((tm, c_out_pad), lambda i, t, cnt, idx: (i, 0))

    if reassoc:
        in_specs = [a_spec, s_spec, xt_spec, w_spec, b_spec]
        operands = (kcnt, kidx, A_pad, stream, x_pad, Wr_pad, b_pad)
    else:
        in_specs = [a_spec, s_spec, xt_spec, w_spec, w_spec, b_spec]
        operands = (kcnt, kidx, A_pad, stream, x_pad, Wl_pad, Wr_pad, b_pad)

    # --- explicit VMEM budget (double-buffered inputs + output + accumulator) ---
    out_isz = 4 if final_log_softmax else 2
    est = (2 * (tm * tk * 2 + tk * c_stream * 2 + tm * c_in_pad * 2
                + (0 if reassoc else c_in_pad * c_out_pad * 2)
                + c_in_pad * c_out_pad * 2 + c_out_pad * 4
                + tm * c_out_pad * out_isz)
           + tm * acc_w * 4)
    vmem_limit = int(min(max(2 * est + (4 << 20), 32 << 20), 56 << 20))

    out = pl.pallas_call(
        kernel,
        out_shape=jax.ShapeDtypeStruct((n_dst_pad, c_out_pad), out_dtype),
        grid_spec=pltpu.PrefetchScalarGridSpec(
            num_scalar_prefetch=2,                # kcnt, kidx -> SMEM
            grid=(mb, kb),
            in_specs=in_specs,
            out_specs=o_spec,
            scratch_shapes=[pltpu.VMEM((tm, acc_w), jnp.float32)],
        ),
        compiler_params=pltpu.CompilerParams(
            dimension_semantics=("parallel", "arbitrary"),
            vmem_limit_bytes=vmem_limit),
    )(*operands)

    return out, n_dst, c_out_real


# ----------------------------------------------------------------------------
# GNN module (parameters + forward)
# ----------------------------------------------------------------------------
def init_gnn_params(key, in_channels, hidden_channels, out_channels, num_layers):
    dims = [in_channels] + [hidden_channels] * (num_layers - 1) + [out_channels]
    params = []
    for i in range(num_layers):
        c_in, c_out = dims[i], dims[i + 1]
        k1, k2, k3, key = jax.random.split(key, 4)
        bound = 1.0 / jnp.sqrt(c_in)
        Wl = jax.random.uniform(k1, (c_in, c_out), jnp.float32, -bound, bound)
        bl = jax.random.uniform(k2, (c_out,), jnp.float32, -bound, bound)
        Wr = jax.random.uniform(k3, (c_in, c_out), jnp.float32, -bound, bound)
        params.append((Wl, bl, Wr))
    return params


def gnn_forward(x, edge_indices, sizes, params, *,
                tm_cap=256, tk_cap=512, min_m_blocks=1):
    """edge_indices: list of [2, E] (src,dst); sizes: list of (n_src, n_dst), outer hop first."""
    num_layers = len(params)
    n_keep = c_keep = None
    for i, (ei, (n_src, n_dst)) in enumerate(zip(edge_indices, sizes)):
        Wl, bl, Wr = params[i]
        last = (i == num_layers - 1)
        x, n_keep, c_keep = gnn_layer(
            ei, n_src, n_dst, x, Wl, bl, Wr,
            apply_relu=not last, final_log_softmax=last,
            tm_cap=tm_cap, tk_cap=tk_cap, min_m_blocks=min_m_blocks)
        # normalize=False, dropout=0.0 -> no-ops
    return x[:n_keep, :c_keep]


# ----------------------------------------------------------------------------
# Pure-JAX f32 reference matching the PyTorch forward
# ----------------------------------------------------------------------------
def build_norm_adj(edge_index, n_src, n_dst):
    src, dst = edge_index[0], edge_index[1]
    counts = jnp.zeros((n_dst, n_src), jnp.float32).at[dst, src].add(1.0)
    deg = counts.sum(axis=1, keepdims=True)
    return counts / jnp.maximum(deg, 1.0)


def gnn_reference(x, edge_indices, sizes, params):
    num_layers = len(params)
    for i, (ei, (n_src, n_dst)) in enumerate(zip(edge_indices, sizes)):
        x_target = x[:n_dst]
        A = build_norm_adj(ei, n_src, n_dst)
        agg = A @ x
        Wl, bl, Wr = params[i]
        x = agg @ Wl + bl + x_target @ Wr
        if i != num_layers - 1:
            x = jnp.maximum(x, 0.0)
    return jax.nn.log_softmax(x, axis=-1)


# ----------------------------------------------------------------------------
# Demo
# ----------------------------------------------------------------------------
if __name__ == "__main__":
    key = jax.random.PRNGKey(0)

    in_channels, hidden_channels, out_channels = 16, 160, 8   # exercises both kernel paths
    num_layers = 2

    # NeighborSampler-style bipartite hop sizes: N0 (all sampled) -> N1 -> N2 (batch)
    N0, N1, N2 = 320, 160, 64
    E0, E1 = 1280, 640

    k_x, k_e0s, k_e0d, k_e1s, k_e1d, k_p = jax.random.split(key, 6)
    x0 = jax.random.normal(k_x, (N0, in_channels), jnp.float32)

    # src ranges restricted so some K blocks are empty -> exercises DMA/MXU skip.
    edge_index_0 = jnp.stack([jax.random.randint(k_e0s, (E0,), 0, 192),   # src
                              jax.random.randint(k_e0d, (E0,), 0, N1)])   # dst
    edge_index_1 = jnp.stack([jax.random.randint(k_e1s, (E1,), 0, 128),
                              jax.random.randint(k_e1d, (E1,), 0, N2)])
    edge_indices = [edge_index_0, edge_index_1]
    sizes = [(N0, N1), (N1, N2)]

    params = init_gnn_params(k_p, in_channels, hidden_channels, out_channels,
                             num_layers)

    # Small tk_cap forces multi-step K accumulation; min_m_blocks=2 forces mb >= 2.
    out = jax.block_until_ready(gnn_forward(x0, edge_indices, sizes, params,
                                            tm_cap=256, tk_cap=128,
                                            min_m_blocks=2))
    assert out.shape == (N2, out_channels)

    ref = jax.block_until_ready(gnn_reference(x0, edge_indices, sizes, params))
    err = float(jnp.max(jnp.abs(out - ref)))
    assert err < 0.25, f"max abs err vs f32 reference: {err}"

    print("KERNEL_OK")
</pallas_src>

<mosaic_0001>
module attributes {stable_mosaic.version = 11 : i64} {
  func.func @_gnn_layer_kernel(%arg0: i32, %arg1: i32, %arg2: memref<2xi32, #tpu.memory_space<smem>>, %arg3: memref<6xi32, #tpu.memory_space<smem>>, %arg4: memref<80x128xbf16, #tpu.memory_space<vmem>>, %arg5: memref<128x128xbf16, #tpu.memory_space<vmem>>, %arg6: memref<80x128xbf16, #tpu.memory_space<vmem>>, %arg7: memref<128x256xbf16, #tpu.memory_space<vmem>>, %arg8: memref<128x256xbf16, #tpu.memory_space<vmem>>, %arg9: memref<1x256xf32, #tpu.memory_space<vmem>>, %arg10: memref<80x256xbf16, #tpu.memory_space<vmem>>, %arg11: memref<80x128xf32, #tpu.memory_space<vmem>>) attributes {dimension_semantics = [#tpu.dimension_semantics<parallel>, #tpu.dimension_semantics<arbitrary>], iteration_bounds = array<i64: 2, 3>, scalar_prefetch = 2 : i64, scratch_operands = 1 : i64, tpu.core_type = #tpu.core_type<tc>, window_params = [{transform_indices = @transform_0, window_bounds = array<i64: 80, 128>}, {transform_indices = @transform_1, window_bounds = array<i64: 128, 128>}, {transform_indices = @transform_2, window_bounds = array<i64: 80, 128>}, {pipeline_mode = #tpu.pipeline_mode<synchronous>, transform_indices = @transform_3, window_bounds = array<i64: 128, 256>}, {pipeline_mode = #tpu.pipeline_mode<synchronous>, transform_indices = @transform_4, window_bounds = array<i64: 128, 256>}, {pipeline_mode = #tpu.pipeline_mode<synchronous>, transform_indices = @transform_5, window_bounds = array<i64: 1, 256>}, {transform_indices = @transform_6, window_bounds = array<i64: 80, 256>}]} {
    %c0_i32 = arith.constant 0 : i32
    %0 = arith.cmpi eq, %arg1, %c0_i32 : i32
    %1 = arith.extui %0 : i1 to i32
    %c0_i32_0 = arith.constant 0 : i32
    %2 = arith.cmpi ne, %1, %c0_i32_0 : i32
    scf.if %2 {
      %cst = arith.constant 0.000000e+00 : f32
      %11 = vector.broadcast %cst : f32 to vector<80x128xf32>
      %c0 = arith.constant 0 : index
      %c0_3 = arith.constant 0 : index
      %12 = vector.load %arg11[%c0, %c0_3] : memref<80x128xf32, #tpu.memory_space<vmem>>, vector<80x128xf32>
      tpu.vector_store %arg11[%c0, %c0_3], %11 {strides = array<i32>} : memref<80x128xf32, #tpu.memory_space<vmem>>, vector<80x128xf32>,
    } else {
    }
    %3 = arith.index_cast %arg0 : i32 to index
    %4 = memref.load %arg2[%3] : memref<2xi32, #tpu.memory_space<smem>>
    %5 = arith.cmpi slt, %arg1, %4 : i32
    %6 = arith.extui %5 : i1 to i32
    %c0_i32_1 = arith.constant 0 : i32
    %7 = arith.cmpi ne, %6, %c0_i32_1 : i32
    scf.if %7 {
      %c0 = arith.constant 0 : index
      %c0_3 = arith.constant 0 : index
      %11 = vector.load %arg11[%c0, %c0_3] : memref<80x128xf32, #tpu.memory_space<vmem>>, vector<80x128xf32>
      %c0_4 = arith.constant 0 : index
      %c0_5 = arith.constant 0 : index
      %12 = vector.load %arg4[%c0_4, %c0_5] : memref<80x128xbf16, #tpu.memory_space<vmem>>, vector<80x128xbf16>
      %c0_6 = arith.constant 0 : index
      %c0_7 = arith.constant 0 : index
      %13 = vector.load %arg5[%c0_6, %c0_7] : memref<128x128xbf16, #tpu.memory_space<vmem>>, vector<128x128xbf16>
      %cst = arith.constant dense<0.000000e+00> : vector<80x128xf32>
      %14 = tpu.matmul %12, %13, %cst {dimension_numbers = #tpu.dot_dimension_numbers<[1], [0], [0], [1], [0, 0, 1, 1], [], []>} : vector<80x128xbf16>, vector<128x128xbf16>, vector<80x128xf32> -> vector<80x128xf32>
      %15 = arith.addf %11, %14 : vector<80x128xf32>
      %c0_8 = arith.constant 0 : index
      %c0_9 = arith.constant 0 : index
      %16 = vector.load %arg11[%c0_8, %c0_9] : memref<80x128xf32, #tpu.memory_space<vmem>>, vector<80x128xf32>
      tpu.vector_store %arg11[%c0_8, %c0_9], %15 {strides = array<i32>} : memref<80x128xf32, #tpu.memory_space<vmem>>, vector<80x128xf32>,
    } else {
    }
    %c2_i32 = arith.constant 2 : i32
    %8 = arith.cmpi eq, %arg1, %c2_i32 : i32
    %9 = arith.extui %8 : i1 to i32
    %c0_i32_2 = arith.constant 0 : i32
    %10 = arith.cmpi ne, %9, %c0_i32_2 : i32
    scf.if %10 {
      %c0 = arith.constant 0 : index
      %c0_3 = arith.constant 0 : index
      %11 = vector.load %arg11[%c0, %c0_3] : memref<80x128xf32, #tpu.memory_space<vmem>>, vector<80x128xf32>
      %12 = arith.truncf %11 : vector<80x128xf32> to vector<80x128xbf16>
      %c0_4 = arith.constant 0 : index
      %c0_5 = arith.constant 0 : index
      %13 = vector.load %arg7[%c0_4, %c0_5] : memref<128x256xbf16, #tpu.memory_space<vmem>>, vector<128x256xbf16>
      %cst = arith.constant dense<0.000000e+00> : vector<80x256xf32>
      %14 = tpu.matmul %12, %13, %cst {dimension_numbers = #tpu.dot_dimension_numbers<[1], [0], [0], [1], [0, 0, 1, 1], [], []>} : vector<80x128xbf16>, vector<128x256xbf16>, vector<80x256xf32> -> vector<80x256xf32>
      %c0_6 = arith.constant 0 : index
      %c0_7 = arith.constant 0 : index
      %15 = vector.load %arg6[%c0_6, %c0_7] : memref<80x128xbf16, #tpu.memory_space<vmem>>, vector<80x128xbf16>
      %c0_8 = arith.constant 0 : index
      %c0_9 = arith.constant 0 : index
      %16 = vector.load %arg8[%c0_8, %c0_9] : memref<128x256xbf16, #tpu.memory_space<vmem>>, vector<128x256xbf16>
      %cst_10 = arith.constant dense<0.000000e+00> : vector<80x256xf32>
      %17 = tpu.matmul %15, %16, %cst_10 {dimension_numbers = #tpu.dot_dimension_numbers<[1], [0], [0], [1], [0, 0, 1, 1], [], []>} : vector<80x128xbf16>, vector<128x256xbf16>, vector<80x256xf32> -> vector<80x256xf32>
      %18 = arith.addf %14, %17 : vector<80x256xf32>
      %c0_11 = arith.constant 0 : index
      %c0_12 = arith.constant 0 : index
      %19 = vector.load %arg9[%c0_11, %c0_12] : memref<1x256xf32, #tpu.memory_space<vmem>>, vector<1x256xf32>
      %20 = vector.broadcast %19 : vector<1x256xf32> to vector<80x256xf32>
      %21 = arith.addf %18, %20 : vector<80x256xf32>
      %cst_13 = arith.constant 0.000000e+00 : f32
      %22 = vector.broadcast %cst_13 : f32 to vector<80x256xf32>
      %23 = arith.maximumf %21, %22 : vector<80x256xf32>
      %24 = arith.truncf %23 : vector<80x256xf32> to vector<80x256xbf16>
      %c0_14 = arith.constant 0 : index
      %c0_15 = arith.constant 0 : index
      %25 = vector.load %arg10[%c0_14, %c0_15] : memref<80x256xbf16, #tpu.memory_space<vmem>>, vector<80x256xbf16>
      tpu.vector_store %arg10[%c0_14, %c0_15], %24 {strides = array<i32>} : memref<80x256xbf16, #tpu.memory_space<vmem>>, vector<80x256xbf16>,
    } else {
    }
    return
  }
  func.func @transform_0(%arg0: i32, %arg1: i32, %arg2: memref<2xi32, #tpu.memory_space<smem>>, %arg3: memref<6xi32, #tpu.memory_space<smem>>) -> (i32, i32) {
    %c3_i32 = arith.constant 3 : i32
    %0 = arith.muli %arg0, %c3_i32 : i32
    %1 = arith.addi %0, %arg1 : i32
    %2 = arith.index_cast %1 : i32 to index
    %3 = memref.load %arg3[%2] : memref<6xi32, #tpu.memory_space<smem>>
    %c0_i32 = arith.constant 0 : i32
    return %arg0, %3 : i32, i32
  }
  func.func @transform_1(%arg0: i32, %arg1: i32, %arg2: memref<2xi32, #tpu.memory_space<smem>>, %arg3: memref<6xi32, #tpu.memory_space<smem>>) -> (i32, i32) {
    %c3_i32 = arith.constant 3 : i32
    %0 = arith.muli %arg0, %c3_i32 : i32
    %1 = arith.addi %0, %arg1 : i32
    %2 = arith.index_cast %1 : i32 to index
    %3 = memref.load %arg3[%2] : memref<6xi32, #tpu.memory_space<smem>>
    %c0_i32 = arith.constant 0 : i32
    %c0_i32_0 = arith.constant 0 : i32
    return %3, %c0_i32 : i32, i32
  }
  func.func @transform_2(%arg0: i32, %arg1: i32, %arg2: memref<2xi32, #tpu.memory_space<smem>>, %arg3: memref<6xi32, #tpu.memory_space<smem>>) -> (i32, i32) {
    %c0_i32 = arith.constant 0 : i32
    %c0_i32_0 = arith.constant 0 : i32
    return %arg0, %c0_i32 : i32, i32
  }
  func.func @transform_3(%arg0: i32, %arg1: i32, %arg2: memref<2xi32, #tpu.memory_space<smem>>, %arg3: memref<6xi32, #tpu.memory_space<smem>>) -> (i32, i32) {
    %c0_i32 = arith.constant 0 : i32
    %c0_i32_0 = arith.constant 0 : i32
    %c0_i32_1 = arith.constant 0 : i32
    return %c0_i32, %c0_i32_0 : i32, i32
  }
  func.func @transform_4(%arg0: i32, %arg1: i32, %arg2: memref<2xi32, #tpu.memory_space<smem>>, %arg3: memref<6xi32, #tpu.memory_space<smem>>) -> (i32, i32) {
    %c0_i32 = arith.constant 0 : i32
    %c0_i32_0 = arith.constant 0 : i32
    %c0_i32_1 = arith.constant 0 : i32
    return %c0_i32, %c0_i32_0 : i32, i32
  }
  func.func @transform_5(%arg0: i32, %arg1: i32, %arg2: memref<2xi32, #tpu.memory_space<smem>>, %arg3: memref<6xi32, #tpu.memory_space<smem>>) -> (i32, i32) {
    %c0_i32 = arith.constant 0 : i32
    %c0_i32_0 = arith.constant 0 : i32
    %c0_i32_1 = arith.constant 0 : i32
    return %c0_i32, %c0_i32_0 : i32, i32
  }
  func.func @transform_6(%arg0: i32, %arg1: i32, %arg2: memref<2xi32, #tpu.memory_space<smem>>, %arg3: memref<6xi32, #tpu.memory_space<smem>>) -> (i32, i32) {
    %c0_i32 = arith.constant 0 : i32
    %c0_i32_0 = arith.constant 0 : i32
    return %arg0, %c0_i32 : i32, i32
  }
}

</mosaic_0001>

<llo_original>
// kernel: tpu_custom_call.1
$region0: #{tpu_custom_call.1}
  #allocation0 [shape = 'u32[]', space=smem, size = 0x4, offset = 0x4, fixed_abs, tag = 'smem constant byte address 0x4 - core index']
  #allocation1 [shape = 'u32[72,128]{1,0:T(1,128)}', space=vmem, size = 0x9000, scoped, tag = 'internal scratch']
  #allocation2 [shape = 'f32[80,128]{1,0:T(8,128)}', space=vmem, size = 0xa000, scoped, tag = 'scratch operand']
  #allocation3 [shape = 's32[1]{0}', space=sflag, size = 0x4, scoped, tag = 'scoped memory for tpu_custom_call.1']
  #allocation4 [shape = 'u8[512]{0}', space=smem, size = 0x200, scoped, tag = 'prefetched SMEM operand 0']
  #allocation5 [shape = 'u8[512]{0}', space=smem, size = 0x200, scoped, tag = 'prefetched SMEM operand 1']
  %s0 = inlined_call_operand.hbm [shape: s32[2], index: 0, kind: input, shape index: {}]
  %s1 = inlined_call_operand.hbm [shape: s32[6], index: 1, kind: input, shape index: {}]
  %s2 = inlined_call_operand.hbm [shape: bf16[160,384], index: 2, kind: input, shape index: {}]
  %s3 = inlined_call_operand.hbm [shape: bf16[384,128], index: 3, kind: input, shape index: {}]
  %s4 = inlined_call_operand.hbm [shape: bf16[384,128], index: 4, kind: input, shape index: {}]
  %s5 = inlined_call_operand.hbm [shape: bf16[128,256], index: 5, kind: input, shape index: {}]
  %s6 = inlined_call_operand.hbm [shape: bf16[128,256], index: 6, kind: input, shape index: {}]
  %s7 = inlined_call_operand.vmem [shape: f32[1,256], index: 7, kind: input, shape index: {}]
  %s8 = inlined_call_operand.hbm [shape: bf16[160,256], index: 8, kind: output, shape index: {}]
  %s9 = sld [smem:[#allocation0]]
  $region89: #{tpu_custom_call.1} parent=0
    _
  %s11 = ssub.s32 1, %s9
  %s12 = scalar_select 0, %s11, %s9
  %s14 = sshll.u32 %s0, 4
  %s15 = int_to_ptr.hbm [resolvable:$true] %s14
  %17 = dma.hbm_to_smem %s15, 16, [#allocation4], [#allocation3]
  %s19 = sshll.u32 %s1, 4
  %s20 = int_to_ptr.hbm [resolvable:$true] %s19
  %22 = dma.hbm_to_smem %s20, 16, [#allocation5], [#allocation3]
  %24 = dma.done [#allocation3], 32
  %25 = sfence
  $region1: #{tpu_custom_call.1} parent=0
    #allocation6 [shape = 'u8[40960]{0}', space=vmem, size = 0xa000, scoped, tag = 'input window, operand 2']
    #allocation7 [shape = 's32[2]{0}', space=sflag, size = 0x8, scoped, tag = 'scoped memory for tpu_custom_call.1']
    #allocation8 [shape = 's32[2]{0}', space=sflag, size = 0x8, scoped, tag = 'scoped memory for tpu_custom_call.1']
    #allocation9 [shape = 'u8[65536]{0}', space=vmem, size = 0x10000, scoped, tag = 'input window, operand 3']
    #allocation10 [shape = 's32[2]{0}', space=sflag, size = 0x8, scoped, tag = 'scoped memory for tpu_custom_call.1']
    #allocation11 [shape = 'u8[40960]{0}', space=vmem, size = 0xa000, scoped, tag = 'input window, operand 4']
    #allocation12 [shape = 'u8[65536]{0}', space=vmem, size = 0x10000, scoped, tag = 'input window, operand 5, single buffered']
    #allocation13 [shape = 's32[1]{0}', space=sflag, size = 0x4, scoped, tag = 'scoped memory for tpu_custom_call.1']
    #allocation14 [shape = 'u8[65536]{0}', space=vmem, size = 0x10000, scoped, tag = 'input window, operand 6, single buffered']
    #allocation15 [shape = 'u8[81920]{0}', space=vmem, size = 0x14000, scoped, tag = 'output window, operand 0']
    %26 = vsyncpa [#allocation7], 0
    %s27 = scalar_lea.sflag [#allocation7], 1
    %28 = vsyncpa %s27, 0
    %29 = vsyncpa [#allocation10], 0
    %s30 = scalar_lea.sflag [#allocation10], 1
    %31 = vsyncpa %s30, 0
    %32 = vsyncpa [#allocation13], 0
    %33 = vsyncpa [#allocation8], 0
    %s34 = scalar_lea.sflag [#allocation8], 1
    %35 = vsyncpa %s34, 0
    loop: start=0, step=1, limit=8
    $region2: #{tpu_custom_call.1} parent=1 // loop_pre_header
      _
    $region3: #{tpu_custom_call.1} parent=1 // loop_header
      %s37 = sphi 0, %s41
      %p38 = scmp.ge.s32.totalorder %s37, 8
      %s44 = sphi 0, %s56
      %s45 = sphi 0, %s52
      %s46 = sphi 0, %s44
      %s47 = sphi 0, %s45
      %s48 = sphi 0, %s46
      %s49 = sphi 0, %s47
      %s67 = sphi 0, %s69
      %s70 = sphi 0, %s67
      %s71 = sphi 0, %s70
      %s87 = sphi 0, %s71
      %s99 = sphi 0, %s101
      %s102 = sphi 0, %s99
      %s103 = sphi 0, %s102
      %s119 = sphi 0, %s103
      %s125 = sphi 0, %s127
      %s128 = sphi 0, %s125
      %s129 = sphi 0, %s128
      %s145 = sphi 0, %s129
      %s149 = sphi 0, %s149
      %s151 = sphi 0, %s149
      %s152 = sphi 0, %s151
      %s166 = sphi 0, %s152
      %s170 = sphi 0, %s170
      %s172 = sphi 0, %s170
      %s173 = sphi 0, %s172
      %s187 = sphi 0, %s173
      %s191 = sphi 0, %s191
      %s193 = sphi 0, %s191
      %s194 = sphi 0, %s193
      %s208 = sphi 0, %s194
      %s214 = sphi 0, %s216
      %s217 = sphi 0, %s214
      %s218 = sphi 0, %s217
      %s234 = sphi 0, %s218
    $region4: #{tpu_custom_call.1} parent=1 // loop_header_branch
      %40 = sbr.rel (%p38) target = $region8
    $region5: #{tpu_custom_call.1} parent=1 // loop_body
      %s42 = ssub.s32 %s37, 1
      %s43 = ssub.s32 %s37, 2
      %s50 = sadd.s32 1, %s45
      %p51 = scmp.ge.s32.totalorder %s50, 3
      %s52 = scalar_select %p51, 0, %s50
      %s53 = sadd.s32 1, %s44
      %s54 = scalar_select %p51, %s53, %s44
      %p55 = scmp.ge.s32.totalorder %s54, 2
      %s56 = scalar_select %p55, 0, %s54
      %s57 = smul.u32 %s44, 3
      %s58 = sadd.s32 %s57, %s45
      %s59 = sld [smem:[#allocation5 + %s58]]
      %s60 = smul.u32 %s56, 3
      %s61 = sadd.s32 %s60, %s52
      %s62 = sld [smem:[#allocation5 + %s61]]
      %s63 = ssub.s32 %s44, %s56
      %s64 = ssub.s32 %s59, %s62
      %s65 = sor.u32 %s63, %s64
      %p66 = scmp.eq.s32.totalorder %s65, 0
      %s68 = sadd.s32 %s67, 1
      %s69 = scalar_select %p66, %s67, %s68
      %p72 = pneg %p66
      %p73 = scmp.eq.s32.totalorder %s37, 5
      %p74 = por %p72, %p73
      %p75 = scmp.ne.s32.totalorder %s67, %s70
      %p76 = scmp.eq.s32.totalorder %s37, 0
      %p77 = por %p75, %p76
      %p78 = scmp.ne.s32.totalorder %s67, %s70
      %p79 = scmp.eq.s32.totalorder %s42, 5
      %p80 = por %p78, %p79
      %p81 = scmp.ne.s32.totalorder %s70, %s71
      %p82 = scmp.eq.s32.totalorder %s42, 0
      %p83 = por %p81, %p82
      %p84 = scmp.ne.s32.totalorder %s70, %s71
      %p85 = scmp.eq.s32.totalorder %s43, 5
      %p86 = por %p84, %p85
      %p88 = scmp.ne.s32.totalorder %s71, %s87
      %p89 = scmp.eq.s32.totalorder %s43, 0
      %p90 = por %p88, %p89
      %s91 = smul.u32 %s44, 3
      %s92 = sadd.s32 %s91, %s45
      %s93 = sld [smem:[#allocation5 + %s92]]
      %s94 = smul.u32 %s56, 3
      %s95 = sadd.s32 %s94, %s52
      %s96 = sld [smem:[#allocation5 + %s95]]
      %s97 = ssub.s32 %s93, %s96
      %p98 = scmp.eq.s32.totalorder %s97, 0
      %s100 = sadd.s32 %s99, 1
      %s101 = scalar_select %p98, %s99, %s100
      %p104 = pneg %p98
      %p105 = scmp.eq.s32.totalorder %s37, 5
      %p106 = por %p104, %p105
      %p107 = scmp.ne.s32.totalorder %s99, %s102
      %p108 = scmp.eq.s32.totalorder %s37, 0
      %p109 = por %p107, %p108
      %p110 = scmp.ne.s32.totalorder %s99, %s102
      %p111 = scmp.eq.s32.totalorder %s42, 5
      %p112 = por %p110, %p111
      %p113 = scmp.ne.s32.totalorder %s102, %s103
      %p114 = scmp.eq.s32.totalorder %s42, 0
      %p115 = por %p113, %p114
      %p116 = scmp.ne.s32.totalorder %s102, %s103
      %p117 = scmp.eq.s32.totalorder %s43, 5
      %p118 = por %p116, %p117
      %p120 = scmp.ne.s32.totalorder %s103, %s119
      %p121 = scmp.eq.s32.totalorder %s43, 0
      %p122 = por %p120, %p121
      %s123 = ssub.s32 %s44, %s56
      %p124 = scmp.eq.s32.totalorder %s123, 0
      %s126 = sadd.s32 %s125, 1
      %s127 = scalar_select %p124, %s125, %s126
      %p130 = pneg %p124
      %p131 = scmp.eq.s32.totalorder %s37, 5
      %p132 = por %p130, %p131
      %p133 = scmp.ne.s32.totalorder %s125, %s128
      %p134 = scmp.eq.s32.totalorder %s37, 0
      %p135 = por %p133, %p134
      %p136 = scmp.ne.s32.totalorder %s125, %s128
      %p137 = scmp.eq.s32.totalorder %s42, 5
      %p138 = por %p136, %p137
      %p139 = scmp.ne.s32.totalorder %s128, %s129
      %p140 = scmp.eq.s32.totalorder %s42, 0
      %p141 = por %p139, %p140
      %p142 = scmp.ne.s32.totalorder %s128, %s129
      %p143 = scmp.eq.s32.totalorder %s43, 5
      %p144 = por %p142, %p143
      %p146 = scmp.ne.s32.totalorder %s129, %s145
      %p147 = scmp.eq.s32.totalorder %s43, 0
      %p148 = por %p146, %p147
      %s150 = sadd.s32 %s149, 1
      %p153 = scmp.eq.s32.totalorder %s37, 5
      %p154 = scmp.ne.s32.totalorder %s149, %s151
      %p155 = scmp.eq.s32.totalorder %s37, 0
      %p156 = por %p154, %p155
      %p157 = scmp.ne.s32.totalorder %s149, %s151
      %p158 = scmp.eq.s32.totalorder %s42, 5
      %p159 = por %p157, %p158
      %p160 = scmp.ne.s32.totalorder %s151, %s152
      %p161 = scmp.eq.s32.totalorder %s42, 0
      %p162 = por %p160, %p161
      %p163 = scmp.ne.s32.totalorder %s151, %s152
      %p164 = scmp.eq.s32.totalorder %s43, 5
      %p165 = por %p163, %p164
      %p167 = scmp.ne.s32.totalorder %s152, %s166
      %p168 = scmp.eq.s32.totalorder %s43, 0
      %p169 = por %p167, %p168
      %s171 = sadd.s32 %s170, 1
      %p174 = scmp.eq.s32.totalorder %s37, 5
      %p175 = scmp.ne.s32.totalorder %s170, %s172
      %p176 = scmp.eq.s32.totalorder %s37, 0
      %p177 = por %p175, %p176
      %p178 = scmp.ne.s32.totalorder %s170, %s172
      %p179 = scmp.eq.s32.totalorder %s42, 5
      %p180 = por %p178, %p179
      %p181 = scmp.ne.s32.totalorder %s172, %s173
      %p182 = scmp.eq.s32.totalorder %s42, 0
      %p183 = por %p181, %p182
      %p184 = scmp.ne.s32.totalorder %s172, %s173
      %p185 = scmp.eq.s32.totalorder %s43, 5
      %p186 = por %p184, %p185
      %p188 = scmp.ne.s32.totalorder %s173, %s187
      %p189 = scmp.eq.s32.totalorder %s43, 0
      %p190 = por %p188, %p189
      %s192 = sadd.s32 %s191, 1
      %p195 = scmp.eq.s32.totalorder %s37, 5
      %p196 = scmp.ne.s32.totalorder %s191, %s193
      %p197 = scmp.eq.s32.totalorder %s37, 0
      %p198 = por %p196, %p197
      %p199 = scmp.ne.s32.totalorder %s191, %s193
      %p200 = scmp.eq.s32.totalorder %s42, 5
      %p201 = por %p199, %p200
      %p202 = scmp.ne.s32.totalorder %s193, %s194
      %p203 = scmp.eq.s32.totalorder %s42, 0
      %p204 = por %p202, %p203
      %p205 = scmp.ne.s32.totalorder %s193, %s194
      %p206 = scmp.eq.s32.totalorder %s43, 5
      %p207 = por %p205, %p206
      %p209 = scmp.ne.s32.totalorder %s194, %s208
      %p210 = scmp.eq.s32.totalorder %s43, 0
      %p211 = por %p209, %p210
      %s212 = ssub.s32 %s44, %s56
      %p213 = scmp.eq.s32.totalorder %s212, 0
      %s215 = sadd.s32 %s214, 1
      %s216 = scalar_select %p213, %s214, %s215
      %p219 = pneg %p213
      %p220 = scmp.eq.s32.totalorder %s37, 5
      %p221 = por %p219, %p220
      %p222 = scmp.ne.s32.totalorder %s214, %s217
      %p223 = scmp.eq.s32.totalorder %s37, 0
      %p224 = por %p222, %p223
      %p225 = scmp.ne.s32.totalorder %s214, %s217
      %p226 = scmp.eq.s32.totalorder %s42, 5
      %p227 = por %p225, %p226
      %p228 = scmp.ne.s32.totalorder %s217, %s218
      %p229 = scmp.eq.s32.totalorder %s42, 0
      %p230 = por %p228, %p229
      %p231 = scmp.ne.s32.totalorder %s217, %s218
      %p232 = scmp.eq.s32.totalorder %s43, 5
      %p233 = por %p231, %p232
      %p235 = scmp.ne.s32.totalorder %s218, %s234
      %p236 = scmp.eq.s32.totalorder %s43, 0
      %p237 = por %p235, %p236
      %p238 = scmp.le.s32.totalorder 1, %s37
      %p239 = scmp.lt.s32.totalorder %s37, 7
      %p240 = pnand %p238, %p239
      %p241 = pneg %p240
      // Predicated region
      $region9: #{tpu_custom_call.1} parent=5 // pred_check
        _
      $region10: #{tpu_custom_call.1} parent=5 // pred_check_branch
        %243 = sbr.rel (%p240) target = $region12
      $region11: #{tpu_custom_call.1} parent=5 // pred_region
        %s244 = ssub.s32 %s37, 1
        // Predicated region
        $region13: #{tpu_custom_call.1} parent=11 // pred_check
          %p245 = pneg %p162
        $region14: #{tpu_custom_call.1} parent=11 // pred_check_branch
          %247 = sbr.rel (%p245) target = $region16
        $region15: #{tpu_custom_call.1} parent=11 // pred_region
          %249 = vsyncadd [#allocation13], 0
          %s250 = sshll.u32 %s5, 4
          %s251 = int_to_ptr.hbm [resolvable:$true] %s250
          %s252 = sshll.u32 [#allocation12], 4
          %s253 = int_to_ptr.vmem [resolvable:$true] %s252
          %258 = dma.hbm_to_vmem [thread:$0]  %s251, 2048, %s253, [#allocation13], 128, 128, 8
        $region16: #{tpu_custom_call.1} parent=11 // pred_fallthru
          _
        // Predicated region
        $region17: #{tpu_custom_call.1} parent=11 // pred_check
          %p259 = pneg %p183
        $region18: #{tpu_custom_call.1} parent=11 // pred_check_branch
          %261 = sbr.rel (%p259) target = $region20
        $region19: #{tpu_custom_call.1} parent=11 // pred_region
          %263 = vsyncadd [#allocation13], 0
          %s264 = sshll.u32 %s6, 4
          %s265 = int_to_ptr.hbm [resolvable:$true] %s264
          %s266 = sshll.u32 [#allocation14], 4
          %s267 = int_to_ptr.vmem [resolvable:$true] %s266
          %272 = dma.hbm_to_vmem [thread:$0]  %s265, 2048, %s267, [#allocation13], 128, 128, 8
        $region20: #{tpu_custom_call.1} parent=11 // pred_fallthru
          _
        // Predicated region
        $region21: #{tpu_custom_call.1} parent=11 // pred_check
          %p273 = pneg %p204
        $region22: #{tpu_custom_call.1} parent=11 // pred_check_branch
          %275 = sbr.rel (%p273) target = $region24
        $region23: #{tpu_custom_call.1} parent=11 // pred_region
          _
        $region24: #{tpu_custom_call.1} parent=11 // pred_fallthru
          _
      $region12: #{tpu_custom_call.1} parent=5 // pred_fallthru
        _
      %p276 = scmp.lt.s32.totalorder %s37, 6
      // Predicated region
      $region25: #{tpu_custom_call.1} parent=5 // pred_check
        %p277 = pneg %p276
      $region26: #{tpu_custom_call.1} parent=5 // pred_check_branch
        %279 = sbr.rel (%p277) target = $region28
      $region27: #{tpu_custom_call.1} parent=5 // pred_region
        // Predicated region
        $region29: #{tpu_custom_call.1} parent=27 // pred_check
          %p280 = pneg %p77
        $region30: #{tpu_custom_call.1} parent=27 // pred_check_branch
          %282 = sbr.rel (%p280) target = $region32
        $region31: #{tpu_custom_call.1} parent=27 // pred_region
          %s283 = sand.u32 %s67, 1
          %s284 = scalar_lea.sflag [#allocation7], %s283
          %s285 = sand.u32 %s67, 1
          %s286 = smul.addr %s285, 40
          %s287 = scalar_lea.vmem [#allocation6], %s286
          %s288 = smul.u32 %s44, 3
          %s289 = sadd.s32 %s288, %s45
          %s290 = sld [smem:[#allocation5 + %s289]]
          %s291 = smul.u32 10, %s44
          %293 = vsyncadd %s284, 0
          %s294 = smul.addr %s291, 3
          %s295 = sadd.s32 %s290, %s294
          %s296 = smul.addr %s295, 4
          %s297 = scalar_lea.hbm %s2, %s296
          %s298 = sshll.u32 %s297, 4
          %s299 = int_to_ptr.hbm [resolvable:$true] %s298
          %s300 = sshll.u32 %s287, 4
          %s301 = int_to_ptr.vmem [resolvable:$true] %s300
          %306 = dma.hbm_to_vmem [thread:$0]  %s299, 640, %s301, %s284, 192, 64, 4
        $region32: #{tpu_custom_call.1} parent=27 // pred_fallthru
          _
        // Predicated region
        $region33: #{tpu_custom_call.1} parent=27 // pred_check
          %p307 = pneg %p109
        $region34: #{tpu_custom_call.1} parent=27 // pred_check_branch
          %309 = sbr.rel (%p307) target = $region36
        $region35: #{tpu_custom_call.1} parent=27 // pred_region
          %s310 = sand.u32 %s37, 1
          %s311 = scalar_lea.sflag [#allocation10], %s310
          %s312 = sand.u32 %s99, 1
          %s313 = smul.addr %s312, 64
          %s314 = scalar_lea.vmem [#allocation9], %s313
          %s315 = smul.u32 %s44, 3
          %s316 = sadd.s32 %s315, %s45
          %s317 = sld [smem:[#allocation5 + %s316]]
          %s318 = smul.u32 16, %s317
          %320 = vsyncadd %s311, 0
          %s321 = smul.addr %s318, 4
          %s322 = scalar_lea.hbm %s3, %s321
          %s323 = sshll.u32 %s322, 4
          %s324 = int_to_ptr.hbm [resolvable:$true] %s323
          %s325 = sshll.u32 %s314, 4
          %s326 = int_to_ptr.vmem [resolvable:$true] %s325
          %331 = dma.hbm_to_vmem [thread:$0]  %s324, 1024, %s326, %s311, 64, 64, 4
        $region36: #{tpu_custom_call.1} parent=27 // pred_fallthru
          _
        // Predicated region
        $region37: #{tpu_custom_call.1} parent=27 // pred_check
          %p332 = pneg %p135
        $region38: #{tpu_custom_call.1} parent=27 // pred_check_branch
          %334 = sbr.rel (%p332) target = $region40
        $region39: #{tpu_custom_call.1} parent=27 // pred_region
          %s335 = sand.u32 %s37, 1
          %s336 = scalar_lea.sflag [#allocation10], %s335
          %s337 = sand.u32 %s125, 1
          %s338 = smul.addr %s337, 40
          %s339 = scalar_lea.vmem [#allocation11], %s338
          %s340 = smul.u32 10, %s44
          %s341 = ssub.s32 48, %s340
          %p342 = scmp.lt.s32.totalorder %s341, 10
          %s343 = scalar_select %p342, %s341, 10
          %s344 = smul.u32 4, %s343
          %s345 = ssub.s32 40, %s344
          %s346 = sshll.u32 %s345, 4
          %347 = vsyncadd %s336, %s346
          %p348 = scmp.ne.s32.totalorder 0, %s344
          %s349 = smul.addr %s340, 4
          %s350 = scalar_lea.hbm %s4, %s349
          %s351 = smul.u32 4, %s343
          %s352 = sshll.u32 %s350, 4
          %s353 = int_to_ptr.hbm [resolvable:$true] %s352
          %s354 = sshll.u32 %s339, 4
          %s355 = int_to_ptr.vmem [resolvable:$true] %s354
          %s356 = sshll.u32 %s351, 4
          %360 = dma.hbm_to_vmem [thread:$0]  (%p348), %s353, %s356, %s355, %s336, 64, 64, 4
        $region40: #{tpu_custom_call.1} parent=27 // pred_fallthru
          _
      $region28: #{tpu_custom_call.1} parent=5 // pred_fallthru
        _
      %p361 = scmp.le.s32.totalorder 1, %s37
      %p362 = scmp.lt.s32.totalorder %s37, 7
      %p363 = pnand %p361, %p362
      %p364 = pneg %p363
      // Predicated region
      $region41: #{tpu_custom_call.1} parent=5 // pred_check
        _
      $region42: #{tpu_custom_call.1} parent=5 // pred_check_branch
        %366 = sbr.rel (%p363) target = $region44
      $region43: #{tpu_custom_call.1} parent=5 // pred_region
        %s367 = ssub.s32 %s37, 1
        %s368 = sand.u32 %s70, 1
        %s369 = scalar_lea.sflag [#allocation7], %s368
        %s370 = sand.u32 %s70, 1
        %s371 = smul.addr %s370, 40
        %s372 = scalar_lea.vmem [#allocation6], %s371
        // Predicated region
        $region45: #{tpu_custom_call.1} parent=43 // pred_check
          %p373 = pneg %p83
        $region46: #{tpu_custom_call.1} parent=43 // pred_check_branch
          %375 = sbr.rel (%p373) target = $region48
        $region47: #{tpu_custom_call.1} parent=43 // pred_region
          %377 = dma.done %s369, 640
        $region48: #{tpu_custom_call.1} parent=43 // pred_fallthru
          _
        %s378 = sand.u32 %s42, 1
        %s379 = scalar_lea.sflag [#allocation10], %s378
        %s380 = sand.u32 %s102, 1
        %s381 = smul.addr %s380, 64
        %s382 = scalar_lea.vmem [#allocation9], %s381
        // Predicated region
        $region49: #{tpu_custom_call.1} parent=43 // pred_check
          %p383 = pneg %p115
        $region50: #{tpu_custom_call.1} parent=43 // pred_check_branch
          %385 = sbr.rel (%p383) target = $region52
        $region51: #{tpu_custom_call.1} parent=43 // pred_region
          %387 = dma.done %s379, 1024
        $region52: #{tpu_custom_call.1} parent=43 // pred_fallthru
          _
        %s388 = sand.u32 %s42, 1
        %s389 = scalar_lea.sflag [#allocation10], %s388
        %s390 = sand.u32 %s128, 1
        %s391 = smul.addr %s390, 40
        %s392 = scalar_lea.vmem [#allocation11], %s391
        // Predicated region
        $region53: #{tpu_custom_call.1} parent=43 // pred_check
          %p393 = pneg %p141
        $region54: #{tpu_custom_call.1} parent=43 // pred_check_branch
          %395 = sbr.rel (%p393) target = $region56
        $region55: #{tpu_custom_call.1} parent=43 // pred_region
          %397 = dma.done %s389, 640
        $region56: #{tpu_custom_call.1} parent=43 // pred_fallthru
          _
        // Predicated region
        $region57: #{tpu_custom_call.1} parent=43 // pred_check
          %p398 = pneg %p162
        $region58: #{tpu_custom_call.1} parent=43 // pred_check_branch
          %400 = sbr.rel (%p398) target = $region60
        $region59: #{tpu_custom_call.1} parent=43 // pred_region
          %402 = dma.done [#allocation13], 2048
        $region60: #{tpu_custom_call.1} parent=43 // pred_fallthru
          _
        // Predicated region
        $region61: #{tpu_custom_call.1} parent=43 // pred_check
          %p403 = pneg %p183
        $region62: #{tpu_custom_call.1} parent=43 // pred_check_branch
          %405 = sbr.rel (%p403) target = $region64
        $region63: #{tpu_custom_call.1} parent=43 // pred_region
          %407 = dma.done [#allocation13], 2048
        $region64: #{tpu_custom_call.1} parent=43 // pred_fallthru
          _
        %s408 = sand.u32 %s70, 1
        %s409 = scalar_lea.sflag [#allocation7], %s408
        %s410 = sand.u32 %s70, 1
        %s411 = smul.addr %s410, 40
        %s412 = scalar_lea.vmem [#allocation6], %s411
        %p413 = pneg %p83
        %p414 = pneg %p80
        %s415 = sand.u32 %s42, 1
        %s416 = scalar_lea.sflag [#allocation10], %s415
        %s417 = sand.u32 %s102, 1
        %s418 = smul.addr %s417, 64
        %s419 = scalar_lea.vmem [#allocation9], %s418
        %p420 = pneg %p115
        %p421 = pneg %p112
        %s422 = sand.u32 %s42, 1
        %s423 = scalar_lea.sflag [#allocation10], %s422
        %s424 = sand.u32 %s128, 1
        %s425 = smul.addr %s424, 40
        %s426 = scalar_lea.vmem [#allocation11], %s425
        %p427 = pneg %p141
        %p428 = pneg %p138
        %p429 = pneg %p162
        %p430 = pneg %p159
        %p431 = pneg %p183
        %p432 = pneg %p180
        %p433 = pneg %p204
        %p434 = pneg %p201
        %p435 = pneg %p230
        %p436 = pneg %p227
        %s437 = sand.u32 %s217, 1
        %s438 = scalar_lea.sflag [#allocation8], %s437
        %s439 = sand.u32 %s217, 1
        %s440 = smul.addr %s439, 80
        %s441 = scalar_lea.vmem [#allocation15], %s440
        %s442 = smul.u32 %s46, 3
        %s443 = sadd.s32 %s442, %s47
        %s444 = sld [smem:[#allocation5 + %s443]]
        %s445 = smul.u32 10, %s46
        %s446 = smul.u32 %s46, 3
        %s447 = sadd.s32 %s446, %s47
        %s448 = sld [smem:[#allocation5 + %s447]]
        %s449 = smul.u32 16, %s448
        %s450 = smul.u32 10, %s46
        %s451 = ssub.s32 48, %s450
        %p452 = scmp.lt.s32.totalorder %s451, 10
        %s453 = scalar_select %p452, %s451, 10
        %s454 = smul.u32 4, %s453
        %s455 = smul.u32 10, %s46
        %p456 = scmp.eq.s32.totalorder %s47, 0
        // Predicated region
        $region65: #{tpu_custom_call.1} parent=43 // pred_check
          %p457 = pneg %p456
        $region66: #{tpu_custom_call.1} parent=43 // pred_check_branch
          %459 = sbr.rel (%p457) target = $region68
        $region67: #{tpu_custom_call.1} parent=43 // pred_region
          %460 = vst [vmem:[#allocation2] sm:$0xff] 0.0
          %461 = vst [vmem:[#allocation2 + $0x8] sm:$0xff] 0.0
          %462 = vst [vmem:[#allocation2 + $0x10] sm:$0xff] 0.0
          %463 = vst [vmem:[#allocation2 + $0x18] sm:$0xff] 0.0
          %464 = vst [vmem:[#allocation2 + $0x20] sm:$0xff] 0.0
          %465 = vst [vmem:[#allocation2 + $0x28] sm:$0xff] 0.0
          %466 = vst [vmem:[#allocation2 + $0x30] sm:$0xff] 0.0
          %467 = vst [vmem:[#allocation2 + $0x38] sm:$0xff] 0.0
          %468 = vst [vmem:[#allocation2 + $0x40] sm:$0xff] 0.0
          %469 = vst [vmem:[#allocation2 + $0x48] sm:$0xff] 0.0
        $region68: #{tpu_custom_call.1} parent=43 // pred_fallthru
          _
        %s470 = sld [smem:[#allocation4 + %s46]]
        %p471 = scmp.lt.s32.totalorder %s47, %s470
        // Predicated region
        $region69: #{tpu_custom_call.1} parent=43 // pred_check
          %p472 = pneg %p471
        $region70: #{tpu_custom_call.1} parent=43 // pred_check_branch
          %474 = sbr.rel (%p472) target = $region72
        $region71: #{tpu_custom_call.1} parent=43 // pred_region
          %v475 = vld [vmem:[#allocation2] sm:$0xff]
          %v476 = vld [vmem:[#allocation2 + $0x8] sm:$0xff]
          %v477 = vld [vmem:[#allocation2 + $0x10] sm:$0xff]
          %v478 = vld [vmem:[#allocation2 + $0x18] sm:$0xff]
          %v479 = vld [vmem:[#allocation2 + $0x20] sm:$0xff]
          %v480 = vld [vmem:[#allocation2 + $0x28] sm:$0xff]
          %v481 = vld [vmem:[#allocation2 + $0x30] sm:$0xff]
          %v482 = vld [vmem:[#allocation2 + $0x38] sm:$0xff]
          %v483 = vld [vmem:[#allocation2 + $0x40] sm:$0xff]
          %v484 = vld [vmem:[#allocation2 + $0x48] sm:$0xff]
          %v485 = vld [vmem:[%s372] sm:$0xf]
          %v486 = vld [vmem:[%s372 + $0x4] sm:$0xf]
          %v487 = vld [vmem:[%s372 + $0x8] sm:$0xf]
          %v488 = vld [vmem:[%s372 + $0xc] sm:$0xf]
          %v489 = vld [vmem:[%s372 + $0x10] sm:$0xf]
          %v490 = vld [vmem:[%s372 + $0x14] sm:$0xf]
          %v491 = vld [vmem:[%s372 + $0x18] sm:$0xf]
          %v492 = vld [vmem:[%s372 + $0x1c] sm:$0xf]
          %v493 = vld [vmem:[%s372 + $0x20] sm:$0xf]
          %v494 = vld [vmem:[%s372 + $0x24] sm:$0xf]
          %v495 = vld [vmem:[%s382] sm:$0xf]
          %v496 = vld [vmem:[%s382 + $0x4] sm:$0xf]
          %v497 = vld [vmem:[%s382 + $0x8] sm:$0xf]
          %v498 = vld [vmem:[%s382 + $0xc] sm:$0xf]
          %v499 = vld [vmem:[%s382 + $0x10] sm:$0xf]
          %v500 = vld [vmem:[%s382 + $0x14] sm:$0xf]
          %v501 = vld [vmem:[%s382 + $0x18] sm:$0xf]
          %v502 = vld [vmem:[%s382 + $0x1c] sm:$0xf]
          %v503 = vld [vmem:[%s382 + $0x20] sm:$0xf]
          %v504 = vld [vmem:[%s382 + $0x24] sm:$0xf]
          %v505 = vld [vmem:[%s382 + $0x28] sm:$0xf]
          %v506 = vld [vmem:[%s382 + $0x2c] sm:$0xf]
          %v507 = vld [vmem:[%s382 + $0x30] sm:$0xf]
          %v508 = vld [vmem:[%s382 + $0x34] sm:$0xf]
          %v509 = vld [vmem:[%s382 + $0x38] sm:$0xf]
          %v510 = vld [vmem:[%s382 + $0x3c] sm:$0xf]
          %v521 = vunpack.c.l.b16 %v485
          %v522 = vunpack.c.l.b16 %v486
          %v523 = vunpack.c.l.b16 %v487
          %v524 = vunpack.c.l.b16 %v488
          %v525 = vunpack.c.l.b16 %v489
          %v526 = vunpack.c.l.b16 %v490
          %v527 = vunpack.c.l.b16 %v491
          %v528 = vunpack.c.l.b16 %v492
          %v529 = vunpack.c.l.b16 %v493
          %v530 = vunpack.c.l.b16 %v494
          %v531 = vpack.c.b16 %v522, %v521
          %v532 = vpack.c.b16 %v524, %v523
          %v533 = vpack.c.b16 %v526, %v525
          %v534 = vpack.c.b16 %v528, %v527
          %v535 = vpack.c.b16 %v530, %v529
          %v557 = vunpack.c.l.b16 %v495
          %v558 = vunpack.c.l.b16 %v496
          %v559 = vunpack.c.l.b16 %v497
          %v560 = vunpack.c.l.b16 %v498
          %v561 = vunpack.c.l.b16 %v499
          %v562 = vunpack.c.l.b16 %v500
          %v563 = vunpack.c.l.b16 %v501
          %v564 = vunpack.c.l.b16 %v502
          %v565 = vunpack.c.l.b16 %v503
          %v566 = vunpack.c.l.b16 %v504
          %v567 = vunpack.c.l.b16 %v505
          %v568 = vunpack.c.l.b16 %v506
          %v569 = vunpack.c.l.b16 %v507
          %v570 = vunpack.c.l.b16 %v508
          %v571 = vunpack.c.l.b16 %v509
          %v572 = vunpack.c.l.b16 %v510
          %v573 = vpack.c.b16 %v558, %v557
          %v574 = vpack.c.b16 %v560, %v559
          %v575 = vpack.c.b16 %v562, %v561
          %v576 = vpack.c.b16 %v564, %v563
          %v577 = vpack.c.b16 %v566, %v565
          %v578 = vpack.c.b16 %v568, %v567
          %v579 = vpack.c.b16 %v570, %v569
          %v580 = vpack.c.b16 %v572, %v571
          %589 = vmatpush.bf16.msra.mxu0 %v580
          %590 = vmatpush.bf16.msra.mxu0 %v579
          %591 = vmatpush.bf16.msra.mxu0 %v578
          %592 = vmatpush.bf16.msra.mxu0 %v577
          %593 = vmatpush.bf16.msra.mxu0 %v576
          %594 = vmatpush.bf16.msra.mxu0 %v575
          %595 = vmatpush.bf16.msra.mxu0 %v574
          %596 = vmatpush.bf16.msra.mxu0 %v573
          %597 = vmatmul.bf16.gmra.mxu0 %v531
          %v598 = vpop.f32.mrf.mxu0
          %v599 = vadd.f32 0.0, %v598
          %v600 = vpop.f32.mrf.mxu0
          %v601 = vadd.f32 0.0, %v600
          %602 = vmatmul.bf16.gmra.mxu0 %v532
          %v603 = vpop.f32.mrf.mxu0
          %v604 = vadd.f32 0.0, %v603
          %v605 = vpop.f32.mrf.mxu0
          %v606 = vadd.f32 0.0, %v605
          %607 = vmatmul.bf16.gmra.mxu0 %v533
          %v608 = vpop.f32.mrf.mxu0
          %v609 = vadd.f32 0.0, %v608
          %v610 = vpop.f32.mrf.mxu0
          %v611 = vadd.f32 0.0, %v610
          %612 = vmatmul.bf16.gmra.mxu0 %v534
          %v613 = vpop.f32.mrf.mxu0
          %v614 = vadd.f32 0.0, %v613
          %v615 = vpop.f32.mrf.mxu0
          %v616 = vadd.f32 0.0, %v615
          %617 = vmatmul.bf16.gmra.mxu0 %v535
          %v618 = vpop.f32.mrf.mxu0
          %v619 = vadd.f32 0.0, %v618
          %v620 = vpop.f32.mrf.mxu0
          %v621 = vadd.f32 0.0, %v620
          %622 = vdwg.mxu0
          %v623 = vadd.f32 %v475, %v599
          %v624 = vadd.f32 %v476, %v601
          %v625 = vadd.f32 %v477, %v604
          %v626 = vadd.f32 %v478, %v606
          %v627 = vadd.f32 %v479, %v609
          %v628 = vadd.f32 %v480, %v611
          %v629 = vadd.f32 %v481, %v614
          %v630 = vadd.f32 %v482, %v616
          %v631 = vadd.f32 %v483, %v619
          %v632 = vadd.f32 %v484, %v621
          %633 = vst [vmem:[#allocation2] sm:$0xff] %v623
          %634 = vst [vmem:[#allocation2 + $0x8] sm:$0xff] %v624
          %635 = vst [vmem:[#allocation2 + $0x10] sm:$0xff] %v625
          %636 = vst [vmem:[#allocation2 + $0x18] sm:$0xff] %v626
          %637 = vst [vmem:[#allocation2 + $0x20] sm:$0xff] %v627
          %638 = vst [vmem:[#allocation2 + $0x28] sm:$0xff] %v628
          %639 = vst [vmem:[#allocation2 + $0x30] sm:$0xff] %v629
          %640 = vst [vmem:[#allocation2 + $0x38] sm:$0xff] %v630
          %641 = vst [vmem:[#allocation2 + $0x40] sm:$0xff] %v631
          %642 = vst [vmem:[#allocation2 + $0x48] sm:$0xff] %v632
        $region72: #{tpu_custom_call.1} parent=43 // pred_fallthru
          _
        %p643 = scmp.eq.s32.totalorder %s47, 2
        // Predicated region
        $region73: #{tpu_custom_call.1} parent=43 // pred_check
          %p644 = pneg %p643
        $region74: #{tpu_custom_call.1} parent=43 // pred_check_branch
          %646 = sbr.rel (%p644) target = $region76
        $region75: #{tpu_custom_call.1} parent=43 // pred_region
          %v647 = vld [vmem:[#allocation2] sm:$0xff]
          %v648 = vld [vmem:[#allocation2 + $0x8] sm:$0xff]
          %v649 = vld [vmem:[#allocation2 + $0x10] sm:$0xff]
          %v650 = vld [vmem:[#allocation2 + $0x18] sm:$0xff]
          %v651 = vld [vmem:[#allocation2 + $0x20] sm:$0xff]
          %v652 = vld [vmem:[#allocation2 + $0x28] sm:$0xff]
          %v653 = vld [vmem:[#allocation2 + $0x30] sm:$0xff]
          %v654 = vld [vmem:[#allocation2 + $0x38] sm:$0xff]
          %v655 = vld [vmem:[#allocation2 + $0x40] sm:$0xff]
          %v656 = vld [vmem:[#allocation2 + $0x48] sm:$0xff]
          %v657 = vpack.c.bf16 %v648, %v647
          %v658 = vpack.c.bf16 %v650, %v649
          %v659 = vpack.c.bf16 %v652, %v651
          %v660 = vpack.c.bf16 %v654, %v653
          %v661 = vpack.c.bf16 %v656, %v655
          %v662 = vld [vmem:[#allocation12] sm:$0xff]
          %v663 = vld [vmem:[#allocation12 + $0x8] sm:$0xff]
          %v664 = vld [vmem:[#allocation12 + $0x10] sm:$0xff]
          %v665 = vld [vmem:[#allocation12 + $0x18] sm:$0xff]
          %v666 = vld [vmem:[#allocation12 + $0x20] sm:$0xff]
          %v667 = vld [vmem:[#allocation12 + $0x28] sm:$0xff]
          %v668 = vld [vmem:[#allocation12 + $0x30] sm:$0xff]
          %v669 = vld [vmem:[#allocation12 + $0x38] sm:$0xff]
          %v670 = vld [vmem:[#allocation12 + $0x40] sm:$0xff]
          %v671 = vld [vmem:[#allocation12 + $0x48] sm:$0xff]
          %v672 = vld [vmem:[#allocation12 + $0x50] sm:$0xff]
          %v673 = vld [vmem:[#allocation12 + $0x58] sm:$0xff]
          %v674 = vld [vmem:[#allocation12 + $0x60] sm:$0xff]
          %v675 = vld [vmem:[#allocation12 + $0x68] sm:$0xff]
          %v676 = vld [vmem:[#allocation12 + $0x70] sm:$0xff]
          %v677 = vld [vmem:[#allocation12 + $0x78] sm:$0xff]
          %v678 = vld [vmem:[%s392] sm:$0xf]
          %v679 = vld [vmem:[%s392 + $0x4] sm:$0xf]
          %v680 = vld [vmem:[%s392 + $0x8] sm:$0xf]
          %v681 = vld [vmem:[%s392 + $0xc] sm:$0xf]
          %v682 = vld [vmem:[%s392 + $0x10] sm:$0xf]
          %v683 = vld [vmem:[%s392 + $0x14] sm:$0xf]
          %v684 = vld [vmem:[%s392 + $0x18] sm:$0xf]
          %v685 = vld [vmem:[%s392 + $0x1c] sm:$0xf]
          %v686 = vld [vmem:[%s392 + $0x20] sm:$0xf]
          %v687 = vld [vmem:[%s392 + $0x24] sm:$0xf]
          %v688 = vld [vmem:[#allocation14] sm:$0xff]
          %v689 = vld [vmem:[#allocation14 + $0x8] sm:$0xff]
          %v690 = vld [vmem:[#allocation14 + $0x10] sm:$0xff]
          %v691 = vld [vmem:[#allocation14 + $0x18] sm:$0xff]
          %v692 = vld [vmem:[#allocation14 + $0x20] sm:$0xff]
          %v693 = vld [vmem:[#allocation14 + $0x28] sm:$0xff]
          %v694 = vld [vmem:[#allocation14 + $0x30] sm:$0xff]
          %v695 = vld [vmem:[#allocation14 + $0x38] sm:$0xff]
          %v696 = vld [vmem:[#allocation14 + $0x40] sm:$0xff]
          %v697 = vld [vmem:[#allocation14 + $0x48] sm:$0xff]
          %v698 = vld [vmem:[#allocation14 + $0x50] sm:$0xff]
          %v699 = vld [vmem:[#allocation14 + $0x58] sm:$0xff]
          %v700 = vld [vmem:[#allocation14 + $0x60] sm:$0xff]
          %v701 = vld [vmem:[#allocation14 + $0x68] sm:$0xff]
          %v702 = vld [vmem:[#allocation14 + $0x70] sm:$0xff]
          %v703 = vld [vmem:[#allocation14 + $0x78] sm:$0xff]
          %v714 = vunpack.c.l.b16 %v678
          %v715 = vunpack.c.l.b16 %v679
          %v716 = vunpack.c.l.b16 %v680
          %v717 = vunpack.c.l.b16 %v681
          %v718 = vunpack.c.l.b16 %v682
          %v719 = vunpack.c.l.b16 %v683
          %v720 = vunpack.c.l.b16 %v684
          %v721 = vunpack.c.l.b16 %v685
          %v722 = vunpack.c.l.b16 %v686
          %v723 = vunpack.c.l.b16 %v687
          %v724 = vpack.c.b16 %v715, %v714
          %v725 = vpack.c.b16 %v717, %v716
          %v726 = vpack.c.b16 %v719, %v718
          %v727 = vpack.c.b16 %v721, %v720
          %v728 = vpack.c.b16 %v723, %v722
          %v750 = vunpack.c.l.b16 %v688
          %v751 = vunpack.c.h.b16 %v688
          %v752 = vunpack.c.l.b16 %v689
          %v753 = vunpack.c.h.b16 %v689
          %v754 = vunpack.c.l.b16 %v690
          %v755 = vunpack.c.h.b16 %v690
          %v756 = vunpack.c.l.b16 %v691
          %v757 = vunpack.c.h.b16 %v691
          %v758 = vunpack.c.l.b16 %v692
          %v759 = vunpack.c.h.b16 %v692
          %v760 = vunpack.c.l.b16 %v693
          %v761 = vunpack.c.h.b16 %v693
          %v762 = vunpack.c.l.b16 %v694
          %v763 = vunpack.c.h.b16 %v694
          %v764 = vunpack.c.l.b16 %v695
          %v765 = vunpack.c.h.b16 %v695
          %v766 = vunpack.c.l.b16 %v696
          %v767 = vunpack.c.h.b16 %v696
          %v768 = vunpack.c.l.b16 %v697
          %v769 = vunpack.c.h.b16 %v697
          %v770 = vunpack.c.l.b16 %v698
          %v771 = vunpack.c.h.b16 %v698
          %v772 = vunpack.c.l.b16 %v699
          %v773 = vunpack.c.h.b16 %v699
          %v774 = vunpack.c.l.b16 %v700
          %v775 = vunpack.c.h.b16 %v700
          %v776 = vunpack.c.l.b16 %v701
          %v777 = vunpack.c.h.b16 %v701
          %v778 = vunpack.c.l.b16 %v702
          %v779 = vunpack.c.h.b16 %v702
          %v780 = vunpack.c.l.b16 %v703
          %v781 = vunpack.c.h.b16 %v703
          %v782 = vpack.c.b16 %v752, %v750
          %v783 = vpack.c.b16 %v753, %v751
          %v784 = vpack.c.b16 %v756, %v754
          %v785 = vpack.c.b16 %v757, %v755
          %v786 = vpack.c.b16 %v760, %v758
          %v787 = vpack.c.b16 %v761, %v759
          %v788 = vpack.c.b16 %v764, %v762
          %v789 = vpack.c.b16 %v765, %v763
          %v790 = vpack.c.b16 %v768, %v766
          %v791 = vpack.c.b16 %v769, %v767
          %v792 = vpack.c.b16 %v772, %v770
          %v793 = vpack.c.b16 %v773, %v771
          %v794 = vpack.c.b16 %v776, %v774
          %v795 = vpack.c.b16 %v777, %v775
          %v796 = vpack.c.b16 %v780, %v778
          %v797 = vpack.c.b16 %v781, %v779
          %814 = vmatpush.bf16.msra.mxu0 %v796
          %815 = vmatpush.bf16.msra.mxu0 %v794
          %816 = vmatpush.bf16.msra.mxu0 %v792
          %817 = vmatpush.bf16.msra.mxu0 %v790
          %818 = vmatpush.bf16.msra.mxu0 %v788
          %819 = vmatpush.bf16.msra.mxu0 %v786
          %820 = vmatpush.bf16.msra.mxu0 %v784
          %821 = vmatpush.bf16.msra.mxu0 %v782
          %822 = vmatmul.bf16.gmra.mxu0 %v724
          %v823 = vpop.f32.mrf.mxu0
          %v824 = vadd.f32 0.0, %v823
          %v825 = vpop.f32.mrf.mxu0
          %v826 = vadd.f32 0.0, %v825
          %827 = vmatmul.bf16.gmra.mxu0 %v725
          %v828 = vpop.f32.mrf.mxu0
          %v829 = vadd.f32 0.0, %v828
          %v830 = vpop.f32.mrf.mxu0
          %v831 = vadd.f32 0.0, %v830
          %832 = vmatmul.bf16.gmra.mxu0 %v726
          %v833 = vpop.f32.mrf.mxu0
          %v834 = vadd.f32 0.0, %v833
          %v835 = vpop.f32.mrf.mxu0
          %v836 = vadd.f32 0.0, %v835
          %837 = vmatmul.bf16.gmra.mxu0 %v727
          %v838 = vpop.f32.mrf.mxu0
          %v839 = vadd.f32 0.0, %v838
          %v840 = vpop.f32.mrf.mxu0
          %v841 = vadd.f32 0.0, %v840
          %842 = vmatmul.bf16.gmra.mxu0 %v728
          %v843 = vpop.f32.mrf.mxu0
          %v844 = vadd.f32 0.0, %v843
          %v845 = vpop.f32.mrf.mxu0
          %v846 = vadd.f32 0.0, %v845
          %847 = vdwg.mxu0
          %848 = vmatpush.bf16.msra.mxu0 %v797
          %849 = vmatpush.bf16.msra.mxu0 %v795
          %850 = vmatpush.bf16.msra.mxu0 %v793
          %851 = vmatpush.bf16.msra.mxu0 %v791
          %852 = vmatpush.bf16.msra.mxu0 %v789
          %853 = vmatpush.bf16.msra.mxu0 %v787
          %854 = vmatpush.bf16.msra.mxu0 %v785
          %855 = vmatpush.bf16.msra.mxu0 %v783
          %856 = vmatmul.bf16.gmra.mxu0 %v724
          %v857 = vpop.f32.mrf.mxu0
          %v858 = vadd.f32 0.0, %v857
          %v859 = vpop.f32.mrf.mxu0
          %v860 = vadd.f32 0.0, %v859
          %861 = vmatmul.bf16.gmra.mxu0 %v725
          %v862 = vpop.f32.mrf.mxu0
          %v863 = vadd.f32 0.0, %v862
          %v864 = vpop.f32.mrf.mxu0
          %v865 = vadd.f32 0.0, %v864
          %866 = vmatmul.bf16.gmra.mxu0 %v726
          %v867 = vpop.f32.mrf.mxu0
          %v868 = vadd.f32 0.0, %v867
          %v869 = vpop.f32.mrf.mxu0
          %v870 = vadd.f32 0.0, %v869
          %871 = vmatmul.bf16.gmra.mxu0 %v727
          %v872 = vpop.f32.mrf.mxu0
          %v873 = vadd.f32 0.0, %v872
          %v874 = vpop.f32.mrf.mxu0
          %v875 = vadd.f32 0.0, %v874
          %876 = vmatmul.bf16.gmra.mxu0 %v728
          %v877 = vpop.f32.mrf.mxu0
          %v878 = vadd.f32 0.0, %v877
          %v879 = vpop.f32.mrf.mxu0
          %v880 = vadd.f32 0.0, %v879
          %881 = vdwg.mxu0
          %v898 = vunpack.c.l.b16 %v662
          %v899 = vunpack.c.h.b16 %v662
          %v900 = vunpack.c.l.b16 %v663
          %v901 = vunpack.c.h.b16 %v663
          %v902 = vunpack.c.l.b16 %v664
          %v903 = vunpack.c.h.b16 %v664
          %v904 = vunpack.c.l.b16 %v665
          %v905 = vunpack.c.h.b16 %v665
          %v906 = vunpack.c.l.b16 %v666
          %v907 = vunpack.c.h.b16 %v666
          %v908 = vunpack.c.l.b16 %v667
          %v909 = vunpack.c.h.b16 %v667
          %v910 = vunpack.c.l.b16 %v668
          %v911 = vunpack.c.h.b16 %v668
          %v912 = vunpack.c.l.b16 %v669
          %v913 = vunpack.c.h.b16 %v669
          %v914 = vunpack.c.l.b16 %v670
          %v915 = vunpack.c.h.b16 %v670
          %v916 = vunpack.c.l.b16 %v671
          %v917 = vunpack.c.h.b16 %v671
          %v918 = vunpack.c.l.b16 %v672
          %v919 = vunpack.c.h.b16 %v672
          %v920 = vunpack.c.l.b16 %v673
          %v921 = vunpack.c.h.b16 %v673
          %v922 = vunpack.c.l.b16 %v674
          %v923 = vunpack.c.h.b16 %v674
          %v924 = vunpack.c.l.b16 %v675
          %v925 = vunpack.c.h.b16 %v675
          %v926 = vunpack.c.l.b16 %v676
          %v927 = vunpack.c.h.b16 %v676
          %v928 = vunpack.c.l.b16 %v677
          %v929 = vunpack.c.h.b16 %v677
          %v930 = vpack.c.b16 %v900, %v898
          %v931 = vpack.c.b16 %v901, %v899
          %v932 = vpack.c.b16 %v904, %v902
          %v933 = vpack.c.b16 %v905, %v903
          %v934 = vpack.c.b16 %v908, %v906
          %v935 = vpack.c.b16 %v909, %v907
          %v936 = vpack.c.b16 %v912, %v910
          %v937 = vpack.c.b16 %v913, %v911
          %v938 = vpack.c.b16 %v916, %v914
          %v939 = vpack.c.b16 %v917, %v915
          %v940 = vpack.c.b16 %v920, %v918
          %v941 = vpack.c.b16 %v921, %v919
          %v942 = vpack.c.b16 %v924, %v922
          %v943 = vpack.c.b16 %v925, %v923
          %v944 = vpack.c.b16 %v928, %v926
          %v945 = vpack.c.b16 %v929, %v927
          %962 = vmatpush.bf16.msra.mxu0 %v944
          %963 = vmatpush.bf16.msra.mxu0 %v942
          %964 = vmatpush.bf16.msra.mxu0 %v940
          %965 = vmatpush.bf16.msra.mxu0 %v938
          %966 = vmatpush.bf16.msra.mxu0 %v936
          %967 = vmatpush.bf16.msra.mxu0 %v934
          %968 = vmatpush.bf16.msra.mxu0 %v932
          %969 = vmatpush.bf16.msra.mxu0 %v930
          %970 = vmatmul.bf16.gmra.mxu0 %v657
          %v971 = vpop.f32.mrf.mxu0
          %v972 = vadd.f32 %v824, %v971
          %v973 = vpop.f32.mrf.mxu0
          %v974 = vadd.f32 %v826, %v973
          %975 = vmatmul.bf16.gmra.mxu0 %v658
          %v976 = vpop.f32.mrf.mxu0
          %v977 = vadd.f32 %v829, %v976
          %v978 = vpop.f32.mrf.mxu0
          %v979 = vadd.f32 %v831, %v978
          %980 = vmatmul.bf16.gmra.mxu0 %v659
          %v981 = vpop.f32.mrf.mxu0
          %v982 = vadd.f32 %v834, %v981
          %v983 = vpop.f32.mrf.mxu0
          %v984 = vadd.f32 %v836, %v983
          %985 = vmatmul.bf16.gmra.mxu0 %v660
          %v986 = vpop.f32.mrf.mxu0
          %v987 = vadd.f32 %v839, %v986
          %v988 = vpop.f32.mrf.mxu0
          %v989 = vadd.f32 %v841, %v988
          %990 = vmatmul.bf16.gmra.mxu0 %v661
          %v991 = vpop.f32.mrf.mxu0
          %v992 = vadd.f32 %v844, %v991
          %v993 = vpop.f32.mrf.mxu0
          %v994 = vadd.f32 %v846, %v993
          %995 = vdwg.mxu0
          %996 = vmatpush.bf16.msra.mxu0 %v945
          %997 = vmatpush.bf16.msra.mxu0 %v943
          %998 = vmatpush.bf16.msra.mxu0 %v941
          %999 = vmatpush.bf16.msra.mxu0 %v939
          %1000 = vmatpush.bf16.msra.mxu0 %v937
          %1001 = vmatpush.bf16.msra.mxu0 %v935
          %1002 = vmatpush.bf16.msra.mxu0 %v933
          %1003 = vmatpush.bf16.msra.mxu0 %v931
          %1004 = vmatmul.bf16.gmra.mxu0 %v657
          %v1005 = vpop.f32.mrf.mxu0
          %v1006 = vadd.f32 %v858, %v1005
          %v1007 = vpop.f32.mrf.mxu0
          %v1008 = vadd.f32 %v860, %v1007
          %1009 = vmatmul.bf16.gmra.mxu0 %v658
          %v1010 = vpop.f32.mrf.mxu0
          %v1011 = vadd.f32 %v863, %v1010
          %v1012 = vpop.f32.mrf.mxu0
          %v1013 = vadd.f32 %v865, %v1012
          %1014 = vmatmul.bf16.gmra.mxu0 %v659
          %v1015 = vpop.f32.mrf.mxu0
          %v1016 = vadd.f32 %v868, %v1015
          %v1017 = vpop.f32.mrf.mxu0
          %v1018 = vadd.f32 %v870, %v1017
          %1019 = vmatmul.bf16.gmra.mxu0 %v660
          %v1020 = vpop.f32.mrf.mxu0
          %v1021 = vadd.f32 %v873, %v1020
          %v1022 = vpop.f32.mrf.mxu0
          %v1023 = vadd.f32 %v875, %v1022
          %1024 = vmatmul.bf16.gmra.mxu0 %v661
          %v1025 = vpop.f32.mrf.mxu0
          %v1026 = vadd.f32 %v878, %v1025
          %v1027 = vpop.f32.mrf.mxu0
          %v1028 = vadd.f32 %v880, %v1027
          %1029 = vdwg.mxu0
          %v1030 = vld [vmem:[%s7] sm:$0x3]
          %v1032 = vperm.slane %v1030, 0
          %v1033 = vperm.slane %v1030, 1
          %v1036 = vadd.f32 %v972, %v1032
          %v1037 = vadd.f32 %v1006, %v1033
          %v1038 = vadd.f32 %v974, %v1032
          %v1039 = vadd.f32 %v1008, %v1033
          %v1040 = vadd.f32 %v977, %v1032
          %v1041 = vadd.f32 %v1011, %v1033
          %v1042 = vadd.f32 %v979, %v1032
          %v1043 = vadd.f32 %v1013, %v1033
          %v1044 = vadd.f32 %v982, %v1032
          %v1045 = vadd.f32 %v1016, %v1033
          %v1046 = vadd.f32 %v984, %v1032
          %v1047 = vadd.f32 %v1018, %v1033
          %v1048 = vadd.f32 %v987, %v1032
          %v1049 = vadd.f32 %v1021, %v1033
          %v1050 = vadd.f32 %v989, %v1032
          %v1051 = vadd.f32 %v1023, %v1033
          %v1052 = vadd.f32 %v992, %v1032
          %v1053 = vadd.f32 %v1026, %v1033
          %v1054 = vadd.f32 %v994, %v1032
          %v1055 = vadd.f32 %v1028, %v1033
          %v1056 = vmax.f32 %v1036, 0.0
          %v1057 = vmax.f32 %v1037, 0.0
          %v1058 = vmax.f32 %v1038, 0.0
          %v1059 = vmax.f32 %v1039, 0.0
          %v1060 = vmax.f32 %v1040, 0.0
          %v1061 = vmax.f32 %v1041, 0.0
          %v1062 = vmax.f32 %v1042, 0.0
          %v1063 = vmax.f32 %v1043, 0.0
          %v1064 = vmax.f32 %v1044, 0.0
          %v1065 = vmax.f32 %v1045, 0.0
          %v1066 = vmax.f32 %v1046, 0.0
          %v1067 = vmax.f32 %v1047, 0.0
          %v1068 = vmax.f32 %v1048, 0.0
          %v1069 = vmax.f32 %v1049, 0.0
          %v1070 = vmax.f32 %v1050, 0.0
          %v1071 = vmax.f32 %v1051, 0.0
          %v1072 = vmax.f32 %v1052, 0.0
          %v1073 = vmax.f32 %v1053, 0.0
          %v1074 = vmax.f32 %v1054, 0.0
          %v1075 = vmax.f32 %v1055, 0.0
          %v1076 = vpack.c.bf16 %v1057, %v1056
          %v1077 = vpack.c.bf16 %v1059, %v1058
          %v1078 = vpack.c.bf16 %v1061, %v1060
          %v1079 = vpack.c.bf16 %v1063, %v1062
          %v1080 = vpack.c.bf16 %v1065, %v1064
          %v1081 = vpack.c.bf16 %v1067, %v1066
          %v1082 = vpack.c.bf16 %v1069, %v1068
          %v1083 = vpack.c.bf16 %v1071, %v1070
          %v1084 = vpack.c.bf16 %v1073, %v1072
          %v1085 = vpack.c.bf16 %v1075, %v1074
          %1086 = vst [vmem:[%s441] sm:$0xff] %v1076
          %1087 = vst [vmem:[%s441 + $0x8] sm:$0xff] %v1077
          %1088 = vst [vmem:[%s441 + $0x10] sm:$0xff] %v1078
          %1089 = vst [vmem:[%s441 + $0x18] sm:$0xff] %v1079
          %1090 = vst [vmem:[%s441 + $0x20] sm:$0xff] %v1080
          %1091 = vst [vmem:[%s441 + $0x28] sm:$0xff] %v1081
          %1092 = vst [vmem:[%s441 + $0x30] sm:$0xff] %v1082
          %1093 = vst [vmem:[%s441 + $0x38] sm:$0xff] %v1083
          %1094 = vst [vmem:[%s441 + $0x40] sm:$0xff] %v1084
          %1095 = vst [vmem:[%s441 + $0x48] sm:$0xff] %v1085
        $region76: #{tpu_custom_call.1} parent=43 // pred_fallthru
          _
        %s1096 = sand.u32 %s217, 1
        %s1097 = scalar_lea.sflag [#allocation8], %s1096
        %s1098 = sand.u32 %s217, 1
        %s1099 = smul.addr %s1098, 80
        %s1100 = scalar_lea.vmem [#allocation15], %s1099
        // Predicated region
        $region77: #{tpu_custom_call.1} parent=43 // pred_check
          %p1101 = pneg %p227
        $region78: #{tpu_custom_call.1} parent=43 // pred_check_branch
          %1103 = sbr.rel (%p1101) target = $region80
        $region79: #{tpu_custom_call.1} parent=43 // pred_region
          %s1104 = smul.u32 10, %s46
          %1106 = vsyncadd %s1097, 0
          %s1107 = smul.addr %s1104, 2
          %s1108 = smul.addr %s1107, 4
          %s1109 = scalar_lea.hbm %s8, %s1108
          %s1110 = sshll.u32 %s1100, 4
          %s1111 = int_to_ptr.vmem [resolvable:$true] %s1110
          %s1112 = sshll.u32 %s1109, 4
          %s1113 = int_to_ptr.hbm [resolvable:$true] %s1112
          %1118 = dma.vmem_to_hbm [thread:$0]  %s1111, 1280, %s1113, %s1097, 128, 128, 8
        $region80: #{tpu_custom_call.1} parent=43 // pred_fallthru
          _
      $region44: #{tpu_custom_call.1} parent=5 // pred_fallthru
        _
      %p1119 = scmp.le.s32.totalorder 2, %s37
      // Predicated region
      $region81: #{tpu_custom_call.1} parent=5 // pred_check
        %p1120 = pneg %p1119
      $region82: #{tpu_custom_call.1} parent=5 // pred_check_branch
        %1122 = sbr.rel (%p1120) target = $region84
      $region83: #{tpu_custom_call.1} parent=5 // pred_region
        %s1123 = ssub.s32 %s37, 2
        // Predicated region
        $region85: #{tpu_custom_call.1} parent=83 // pred_check
          %p1124 = pneg %p233
        $region86: #{tpu_custom_call.1} parent=83 // pred_check_branch
          %1126 = sbr.rel (%p1124) target = $region88
        $region87: #{tpu_custom_call.1} parent=83 // pred_region
          %s1127 = sand.u32 %s218, 1
          %s1128 = scalar_lea.sflag [#allocation8], %s1127
          %s1129 = sand.u32 %s218, 1
          %s1130 = smul.addr %s1129, 80
          %s1131 = scalar_lea.vmem [#allocation15], %s1130
          %1133 = dma.done %s1128, 1280
        $region88: #{tpu_custom_call.1} parent=83 // pred_fallthru
          _
      $region84: #{tpu_custom_call.1} parent=5 // pred_fallthru
        _
    $region6: #{tpu_custom_call.1} parent=1 // loop_footer
      %s41 = sadd.s32 1, %s37
    $region7: #{tpu_custom_call.1} parent=1 // loop_footer_branch
      %36 = sbr.rel target = $region3
    $region8: #{tpu_custom_call.1} parent=1 // loop_exit
      _
    %1134 = vsyncpa [#allocation7], 1
    %s1135 = scalar_lea.sflag [#allocation7], 1
    %1136 = vsyncpa %s1135, 1
    %1137 = vsyncpa [#allocation10], 1
    %s1138 = scalar_lea.sflag [#allocation10], 1
    %1139 = vsyncpa %s1138, 1
    %1140 = vsyncpa [#allocation13], 1
    %1141 = vsyncpa [#allocation8], 1
    %s1142 = scalar_lea.sflag [#allocation8], 1
    %1143 = vsyncpa %s1142, 1

</llo_original>
